<compile_context>
chip_gen: v5e
topology: v5e:2x2
jax: 0.10.0
libtpu: 0.0.40
codegen_flags: <defaults>
</compile_context>

<pallas_src>
import jax
import jax.numpy as jnp
import numpy as np
from jax.experimental import pallas as pl
from jax.experimental.pallas import tpu as pltpu


def _boxfilter_kernel(bh_ref, bw_ref, x_ref, o_ref):
    B, H, W = x_ref.shape
    cdt = bh_ref.dtype                       # compute dtype (bf16 or f32)
    bh = bh_ref[...]                         # (H, H) banded box matrix
    bw = bw_ref[...]                         # (W, W) banded box matrix
    x = x_ref[...].astype(cdt)               # (B, H, W)

    # ---- W direction: one big lane-dense MXU matmul over all B images ----
    z = jnp.dot(x.reshape(B * H, W), bw, preferred_element_type=jnp.float32)
    z = z.reshape(B, H, W).astype(cdt)

    # ---- H direction: Bh stays resident as MXU weights across the B images ----
    for b in range(B):
        o_ref[b] = jnp.dot(bh, z[b],
                           preferred_element_type=jnp.float32).astype(o_ref.dtype)


def _band_matrix(n, r, dtype):
    """B[i, j] = 1 iff max(0, i-r) <= j <= min(n-1, i+r)  (i.e. |i-j| <= r)."""
    idx = jnp.arange(n, dtype=jnp.int32)
    return (jnp.abs(idx[:, None] - idx[None, :]) <= r).astype(dtype)


def box_filter(x, r):
    """Pallas BoxFilter. x: (N, C, H, W); requires r >= 1, H >= 2r+1, W >= 2r+1."""
    N, C, H, W = x.shape
    assert r >= 1 and H >= 2 * r + 1 and W >= 2 * r + 1
    nc = N * C
    x2 = x.reshape(nc, H, W)

    # bf16 operands run at full MXU rate on v6e/v7x; f32 stays f32.
    mat_dtype = jnp.bfloat16 if x.dtype == jnp.bfloat16 else jnp.float32
    mat_itemsize = jnp.dtype(mat_dtype).itemsize
    x_itemsize = jnp.dtype(x.dtype).itemsize
    mat_bytes = (H * H + W * W) * mat_itemsize

    # ---- pick how many images to batch per grid step ----
    budget = 24 * 1024 * 1024  # keep comfortably under v7x's 64 MiB VMEM

    def fits(b):
        blk = b * H * W
        # in+out double-buffered blocks + f32 intermediate + resident matrices
        return 4 * blk * x_itemsize + 2 * blk * 4 + 2 * mat_bytes <= budget

    divisors = [d for d in range(1, nc + 1) if nc % d == 0]
    preferred = [d for d in divisors if fits(d) and nc // d >= 2]  # v7x: 2 TCs
    if preferred:
        B = max(preferred)
    else:
        ok = [d for d in divisors if fits(d)]
        B = max(ok) if ok else 1
    grid = nc // B
    # TODO(synk): very large single images (block > ~24 MiB) would need spatial
    # tiling of the two matmuls; not needed for typical guided-filter sizes.

    blk = B * H * W
    vmem_needed = 4 * blk * x_itemsize + 2 * blk * 4 + 2 * mat_bytes + (2 << 20)
    vmem_limit = int(min(max(vmem_needed, 32 * 1024 * 1024), 128 * 1024 * 1024))

    cost = pl.CostEstimate(
        flops=2 * nc * (H * H * W + H * W * W),
        transcendentals=0,
        bytes_accessed=2 * nc * H * W * x_itemsize + mat_bytes,
    )

    bh = _band_matrix(H, r, mat_dtype)
    bw = _band_matrix(W, r, mat_dtype)

    out = pl.pallas_call(
        _boxfilter_kernel,
        out_shape=jax.ShapeDtypeStruct((nc, H, W), x.dtype),
        grid=(grid,),
        in_specs=[
            pl.BlockSpec((H, H), lambda i: (0, 0)),       # Bh: resident constant
            pl.BlockSpec((W, W), lambda i: (0, 0)),       # Bw: resident constant
            pl.BlockSpec((B, H, W), lambda i: (i, 0, 0)),  # batched images
        ],
        out_specs=pl.BlockSpec((B, H, W), lambda i: (i, 0, 0)),
        compiler_params=pltpu.CompilerParams(
            dimension_semantics=("parallel",),
            vmem_limit_bytes=vmem_limit,
        ),
        cost_estimate=cost,
    )(bh, bw, x2)
    return out.reshape(N, C, H, W)


def box_filter_ref(x, r):
    """Pure-JAX reference mirroring the PyTorch code exactly."""
    def diff_x(a):
        H = a.shape[2]
        left = a[:, :, r:2 * r + 1]
        middle = a[:, :, 2 * r + 1:] - a[:, :, :H - 2 * r - 1]
        right = a[:, :, H - 1:H] - a[:, :, H - 2 * r - 1:H - r - 1]
        return jnp.concatenate([left, middle, right], axis=2)

    def diff_y(a):
        W = a.shape[3]
        left = a[:, :, :, r:2 * r + 1]
        middle = a[:, :, :, 2 * r + 1:] - a[:, :, :, :W - 2 * r - 1]
        right = a[:, :, :, W - 1:W] - a[:, :, :, W - 2 * r - 1:W - r - 1]
        return jnp.concatenate([left, middle, right], axis=3)

    return diff_y(diff_x(jnp.cumsum(x, axis=2)).cumsum(axis=3))


if __name__ == "__main__":
    r = 2
    N, C, H, W = 2, 4, 16, 16
    key = jax.random.PRNGKey(0)
    x = jax.random.normal(key, (N, C, H, W), dtype=jnp.float32)

    out = jax.block_until_ready(box_filter(x, r))
    ref = jax.block_until_ready(box_filter_ref(x, r))

    assert out.shape == (N, C, H, W)
    np.testing.assert_allclose(np.asarray(out), np.asarray(ref),
                               rtol=1e-5, atol=1e-5)
    print("KERNEL_OK")
</pallas_src>

<mosaic_0001>
module attributes {stable_mosaic.version = 11 : i64} {
  func.func @_boxfilter_kernel(%arg0: i32, %arg1: memref<16x16xf32, #tpu.memory_space<vmem>>, %arg2: memref<16x16xf32, #tpu.memory_space<vmem>>, %arg3: memref<4x16x16xf32, #tpu.memory_space<vmem>>, %arg4: memref<4x16x16xf32, #tpu.memory_space<vmem>>) attributes {dimension_semantics = [#tpu.dimension_semantics<parallel>], iteration_bounds = array<i64: 2>, scalar_prefetch = 0 : i64, scratch_operands = 0 : i64, tpu.core_type = #tpu.core_type<tc>, window_params = [{pipeline_mode = #tpu.pipeline_mode<synchronous>, transform_indices = @transform_0, window_bounds = array<i64: 16, 16>}, {pipeline_mode = #tpu.pipeline_mode<synchronous>, transform_indices = @transform_1, window_bounds = array<i64: 16, 16>}, {transform_indices = @transform_2, window_bounds = array<i64: 4, 16, 16>}, {transform_indices = @transform_3, window_bounds = array<i64: 4, 16, 16>}]} {
    %c0 = arith.constant 0 : index
    %c0_0 = arith.constant 0 : index
    %0 = vector.load %arg1[%c0, %c0_0] : memref<16x16xf32, #tpu.memory_space<vmem>>, vector<16x16xf32>
    %c0_1 = arith.constant 0 : index
    %c0_2 = arith.constant 0 : index
    %1 = vector.load %arg2[%c0_1, %c0_2] : memref<16x16xf32, #tpu.memory_space<vmem>>, vector<16x16xf32>
    %c0_3 = arith.constant 0 : index
    %c0_4 = arith.constant 0 : index
    %c0_5 = arith.constant 0 : index
    %2 = vector.load %arg3[%c0_3, %c0_4, %c0_5] : memref<4x16x16xf32, #tpu.memory_space<vmem>>, vector<4x16x16xf32>
    %3 = vector.shape_cast %2 : vector<4x16x16xf32> to vector<64x16xf32>
    %cst = arith.constant dense<0.000000e+00> : vector<64x16xf32>
    %4 = tpu.matmul %3, %1, %cst {dimension_numbers = #tpu.dot_dimension_numbers<[1], [0], [0], [1], [0, 0, 1, 1], [], []>} : vector<64x16xf32>, vector<16x16xf32>, vector<64x16xf32> -> vector<64x16xf32>
    %5 = vector.shape_cast %4 : vector<64x16xf32> to vector<4x16x16xf32>
    %6 = vector.extract_strided_slice %5 {offsets = [0, 0, 0], sizes = [1, 16, 16], strides = [1, 1, 1]} : vector<4x16x16xf32> to vector<1x16x16xf32>
    %7 = vector.shape_cast %6 : vector<1x16x16xf32> to vector<16x16xf32>
    %cst_6 = arith.constant dense<0.000000e+00> : vector<16x16xf32>
    %8 = tpu.matmul %0, %7, %cst_6 {dimension_numbers = #tpu.dot_dimension_numbers<[1], [0], [0], [1], [0, 0, 1, 1], [], []>} : vector<16x16xf32>, vector<16x16xf32>, vector<16x16xf32> -> vector<16x16xf32>
    %c0_7 = arith.constant 0 : index
    %c0_8 = arith.constant 0 : index
    %c0_9 = arith.constant 0 : index
    %9 = vector.load %arg4[%c0_7, %c0_8, %c0_9] : memref<4x16x16xf32, #tpu.memory_space<vmem>>, vector<1x16x16xf32>
    %10 = vector.shape_cast %9 : vector<1x16x16xf32> to vector<16x16xf32>
    %11 = vector.shape_cast %8 : vector<16x16xf32> to vector<1x16x16xf32>
    tpu.vector_store %arg4[%c0_7, %c0_8, %c0_9], %11 {strides = array<i32>} : memref<4x16x16xf32, #tpu.memory_space<vmem>>, vector<1x16x16xf32>,
    %12 = vector.extract_strided_slice %5 {offsets = [1, 0, 0], sizes = [1, 16, 16], strides = [1, 1, 1]} : vector<4x16x16xf32> to vector<1x16x16xf32>
    %13 = vector.shape_cast %12 : vector<1x16x16xf32> to vector<16x16xf32>
    %cst_10 = arith.constant dense<0.000000e+00> : vector<16x16xf32>
    %14 = tpu.matmul %0, %13, %cst_10 {dimension_numbers = #tpu.dot_dimension_numbers<[1], [0], [0], [1], [0, 0, 1, 1], [], []>} : vector<16x16xf32>, vector<16x16xf32>, vector<16x16xf32> -> vector<16x16xf32>
    %c1 = arith.constant 1 : index
    %c0_11 = arith.constant 0 : index
    %c0_12 = arith.constant 0 : index
    %15 = vector.load %arg4[%c1, %c0_11, %c0_12] : memref<4x16x16xf32, #tpu.memory_space<vmem>>, vector<1x16x16xf32>
    %16 = vector.shape_cast %15 : vector<1x16x16xf32> to vector<16x16xf32>
    %17 = vector.shape_cast %14 : vector<16x16xf32> to vector<1x16x16xf32>
    tpu.vector_store %arg4[%c1, %c0_11, %c0_12], %17 {strides = array<i32>} : memref<4x16x16xf32, #tpu.memory_space<vmem>>, vector<1x16x16xf32>,
    %18 = vector.extract_strided_slice %5 {offsets = [2, 0, 0], sizes = [1, 16, 16], strides = [1, 1, 1]} : vector<4x16x16xf32> to vector<1x16x16xf32>
    %19 = vector.shape_cast %18 : vector<1x16x16xf32> to vector<16x16xf32>
    %cst_13 = arith.constant dense<0.000000e+00> : vector<16x16xf32>
    %20 = tpu.matmul %0, %19, %cst_13 {dimension_numbers = #tpu.dot_dimension_numbers<[1], [0], [0], [1], [0, 0, 1, 1], [], []>} : vector<16x16xf32>, vector<16x16xf32>, vector<16x16xf32> -> vector<16x16xf32>
    %c2 = arith.constant 2 : index
    %c0_14 = arith.constant 0 : index
    %c0_15 = arith.constant 0 : index
    %21 = vector.load %arg4[%c2, %c0_14, %c0_15] : memref<4x16x16xf32, #tpu.memory_space<vmem>>, vector<1x16x16xf32>
    %22 = vector.shape_cast %21 : vector<1x16x16xf32> to vector<16x16xf32>
    %23 = vector.shape_cast %20 : vector<16x16xf32> to vector<1x16x16xf32>
    tpu.vector_store %arg4[%c2, %c0_14, %c0_15], %23 {strides = array<i32>} : memref<4x16x16xf32, #tpu.memory_space<vmem>>, vector<1x16x16xf32>,
    %24 = vector.extract_strided_slice %5 {offsets = [3, 0, 0], sizes = [1, 16, 16], strides = [1, 1, 1]} : vector<4x16x16xf32> to vector<1x16x16xf32>
    %25 = vector.shape_cast %24 : vector<1x16x16xf32> to vector<16x16xf32>
    %cst_16 = arith.constant dense<0.000000e+00> : vector<16x16xf32>
    %26 = tpu.matmul %0, %25, %cst_16 {dimension_numbers = #tpu.dot_dimension_numbers<[1], [0], [0], [1], [0, 0, 1, 1], [], []>} : vector<16x16xf32>, vector<16x16xf32>, vector<16x16xf32> -> vector<16x16xf32>
    %c3 = arith.constant 3 : index
    %c0_17 = arith.constant 0 : index
    %c0_18 = arith.constant 0 : index
    %27 = vector.load %arg4[%c3, %c0_17, %c0_18] : memref<4x16x16xf32, #tpu.memory_space<vmem>>, vector<1x16x16xf32>
    %28 = vector.shape_cast %27 : vector<1x16x16xf32> to vector<16x16xf32>
    %29 = vector.shape_cast %26 : vector<16x16xf32> to vector<1x16x16xf32>
    tpu.vector_store %arg4[%c3, %c0_17, %c0_18], %29 {strides = array<i32>} : memref<4x16x16xf32, #tpu.memory_space<vmem>>, vector<1x16x16xf32>,
    return
  }
  func.func @transform_0(%arg0: i32) -> (i32, i32) {
    %c0_i32 = arith.constant 0 : i32
    %c0_i32_0 = arith.constant 0 : i32
    %c0_i32_1 = arith.constant 0 : i32
    return %c0_i32, %c0_i32_0 : i32, i32
  }
  func.func @transform_1(%arg0: i32) -> (i32, i32) {
    %c0_i32 = arith.constant 0 : i32
    %c0_i32_0 = arith.constant 0 : i32
    %c0_i32_1 = arith.constant 0 : i32
    return %c0_i32, %c0_i32_0 : i32, i32
  }
  func.func @transform_2(%arg0: i32) -> (i32, i32, i32) {
    %c0_i32 = arith.constant 0 : i32
    %c0_i32_0 = arith.constant 0 : i32
    %c0_i32_1 = arith.constant 0 : i32
    return %arg0, %c0_i32, %c0_i32_0 : i32, i32, i32
  }
  func.func @transform_3(%arg0: i32) -> (i32, i32, i32) {
    %c0_i32 = arith.constant 0 : i32
    %c0_i32_0 = arith.constant 0 : i32
    %c0_i32_1 = arith.constant 0 : i32
    return %arg0, %c0_i32, %c0_i32_0 : i32, i32, i32
  }
}

</mosaic_0001>

<llo_original>
// kernel: tpu_custom_call.1
$region0: #{tpu_custom_call.1}
  #allocation0 [shape = 'u32[]', space=smem, size = 0x4, offset = 0x4, fixed_abs, tag = 'smem constant byte address 0x4 - core index']
  #allocation1 [shape = 'u32[72,128]{1,0:T(1,128)}', space=vmem, size = 0x9000, scoped, tag = 'internal scratch']
  %s0 = inlined_call_operand.hbm [shape: f32[16,16], index: 0, kind: input, shape index: {}]
  %s1 = inlined_call_operand.hbm [shape: f32[16,16], index: 1, kind: input, shape index: {}]
  %s2 = inlined_call_operand.hbm [shape: f32[8,16,16], index: 2, kind: input, shape index: {}]
  %s3 = inlined_call_operand.hbm [shape: f32[8,16,16], index: 3, kind: output, shape index: {}]
  %s4 = sld [smem:[#allocation0]]
  $region57: #{tpu_custom_call.1} parent=0
    _
  %s6 = ssub.s32 1, %s4
  %s7 = scalar_select 0, %s6, %s4
  $region1: #{tpu_custom_call.1} parent=0
    #allocation2 [shape = 'u8[8192]{0}', space=vmem, size = 0x2000, scoped, tag = 'input window, operand 0, single buffered']
    #allocation3 [shape = 's32[2]{0}', space=sflag, size = 0x8, scoped, tag = 'scoped memory for tpu_custom_call.1']
    #allocation4 [shape = 's32[2]{0}', space=sflag, size = 0x8, scoped, tag = 'scoped memory for tpu_custom_call.1']
    #allocation5 [shape = 'u8[8192]{0}', space=vmem, size = 0x2000, scoped, tag = 'input window, operand 1, single buffered']
    #allocation6 [shape = 's32[1]{0}', space=sflag, size = 0x4, scoped, tag = 'scoped memory for tpu_custom_call.1']
    #allocation7 [shape = 'u8[65536]{0}', space=vmem, size = 0x10000, scoped, tag = 'input window, operand 2']
    #allocation8 [shape = 'u8[65536]{0}', space=vmem, size = 0x10000, scoped, tag = 'output window, operand 0']
    %8 = vsyncpa [#allocation3], 0
    %9 = vsyncpa [#allocation6], 0
    %10 = vsyncpa [#allocation4], 0
    %s11 = scalar_lea.sflag [#allocation4], 1
    %12 = vsyncpa %s11, 0
    loop: start=0, step=1, limit=4
    $region2: #{tpu_custom_call.1} parent=1 // loop_pre_header
      _
    $region3: #{tpu_custom_call.1} parent=1 // loop_header
      %s14 = sphi 0, %s18
      %p15 = scmp.ge.s32.totalorder %s14, 4
      %s22 = sphi 0, %s22
      %s24 = sphi 0, %s22
      %s25 = sphi 0, %s24
      %s39 = sphi 0, %s25
      %s43 = sphi 0, %s43
      %s45 = sphi 0, %s43
      %s46 = sphi 0, %s45
      %s60 = sphi 0, %s46
      %s66 = sphi 0, %s68
      %s69 = sphi 0, %s66
      %s70 = sphi 0, %s69
      %s86 = sphi 0, %s70
      %s92 = sphi 0, %s94
      %s95 = sphi 0, %s92
      %s96 = sphi 0, %s95
      %s112 = sphi 0, %s96
    $region4: #{tpu_custom_call.1} parent=1 // loop_header_branch
      %17 = sbr.rel (%p15) target = $region8
    $region5: #{tpu_custom_call.1} parent=1 // loop_body
      %s19 = ssub.s32 %s14, 1
      %s20 = ssub.s32 %s14, 2
      %s21 = sadd.s32 %s14, 1
      %s23 = sadd.s32 %s22, 1
      %p26 = scmp.eq.s32.totalorder %s14, 1
      %p27 = scmp.ne.s32.totalorder %s22, %s24
      %p28 = scmp.eq.s32.totalorder %s14, 0
      %p29 = por %p27, %p28
      %p30 = scmp.ne.s32.totalorder %s22, %s24
      %p31 = scmp.eq.s32.totalorder %s19, 1
      %p32 = por %p30, %p31
      %p33 = scmp.ne.s32.totalorder %s24, %s25
      %p34 = scmp.eq.s32.totalorder %s19, 0
      %p35 = por %p33, %p34
      %p36 = scmp.ne.s32.totalorder %s24, %s25
      %p37 = scmp.eq.s32.totalorder %s20, 1
      %p38 = por %p36, %p37
      %p40 = scmp.ne.s32.totalorder %s25, %s39
      %p41 = scmp.eq.s32.totalorder %s20, 0
      %p42 = por %p40, %p41
      %s44 = sadd.s32 %s43, 1
      %p47 = scmp.eq.s32.totalorder %s14, 1
      %p48 = scmp.ne.s32.totalorder %s43, %s45
      %p49 = scmp.eq.s32.totalorder %s14, 0
      %p50 = por %p48, %p49
      %p51 = scmp.ne.s32.totalorder %s43, %s45
      %p52 = scmp.eq.s32.totalorder %s19, 1
      %p53 = por %p51, %p52
      %p54 = scmp.ne.s32.totalorder %s45, %s46
      %p55 = scmp.eq.s32.totalorder %s19, 0
      %p56 = por %p54, %p55
      %p57 = scmp.ne.s32.totalorder %s45, %s46
      %p58 = scmp.eq.s32.totalorder %s20, 1
      %p59 = por %p57, %p58
      %p61 = scmp.ne.s32.totalorder %s46, %s60
      %p62 = scmp.eq.s32.totalorder %s20, 0
      %p63 = por %p61, %p62
      %s64 = ssub.s32 %s14, %s21
      %p65 = scmp.eq.s32.totalorder %s64, 0
      %s67 = sadd.s32 %s66, 1
      %s68 = scalar_select %p65, %s66, %s67
      %p71 = pneg %p65
      %p72 = scmp.eq.s32.totalorder %s14, 1
      %p73 = por %p71, %p72
      %p74 = scmp.ne.s32.totalorder %s66, %s69
      %p75 = scmp.eq.s32.totalorder %s14, 0
      %p76 = por %p74, %p75
      %p77 = scmp.ne.s32.totalorder %s66, %s69
      %p78 = scmp.eq.s32.totalorder %s19, 1
      %p79 = por %p77, %p78
      %p80 = scmp.ne.s32.totalorder %s69, %s70
      %p81 = scmp.eq.s32.totalorder %s19, 0
      %p82 = por %p80, %p81
      %p83 = scmp.ne.s32.totalorder %s69, %s70
      %p84 = scmp.eq.s32.totalorder %s20, 1
      %p85 = por %p83, %p84
      %p87 = scmp.ne.s32.totalorder %s70, %s86
      %p88 = scmp.eq.s32.totalorder %s20, 0
      %p89 = por %p87, %p88
      %s90 = ssub.s32 %s14, %s21
      %p91 = scmp.eq.s32.totalorder %s90, 0
      %s93 = sadd.s32 %s92, 1
      %s94 = scalar_select %p91, %s92, %s93
      %p97 = pneg %p91
      %p98 = scmp.eq.s32.totalorder %s14, 1
      %p99 = por %p97, %p98
      %p100 = scmp.ne.s32.totalorder %s92, %s95
      %p101 = scmp.eq.s32.totalorder %s14, 0
      %p102 = por %p100, %p101
      %p103 = scmp.ne.s32.totalorder %s92, %s95
      %p104 = scmp.eq.s32.totalorder %s19, 1
      %p105 = por %p103, %p104
      %p106 = scmp.ne.s32.totalorder %s95, %s96
      %p107 = scmp.eq.s32.totalorder %s19, 0
      %p108 = por %p106, %p107
      %p109 = scmp.ne.s32.totalorder %s95, %s96
      %p110 = scmp.eq.s32.totalorder %s20, 1
      %p111 = por %p109, %p110
      %p113 = scmp.ne.s32.totalorder %s96, %s112
      %p114 = scmp.eq.s32.totalorder %s20, 0
      %p115 = por %p113, %p114
      %p116 = scmp.le.s32.totalorder 1, %s14
      %p117 = scmp.lt.s32.totalorder %s14, 3
      %p118 = pnand %p116, %p117
      %p119 = pneg %p118
      // Predicated region
      $region9: #{tpu_custom_call.1} parent=5 // pred_check
        _
      $region10: #{tpu_custom_call.1} parent=5 // pred_check_branch
        %121 = sbr.rel (%p118) target = $region12
      $region11: #{tpu_custom_call.1} parent=5 // pred_region
        %s122 = ssub.s32 %s14, 1
        // Predicated region
        $region13: #{tpu_custom_call.1} parent=11 // pred_check
          %p123 = pneg %p35
        $region14: #{tpu_custom_call.1} parent=11 // pred_check_branch
          %125 = sbr.rel (%p123) target = $region16
        $region15: #{tpu_custom_call.1} parent=11 // pred_region
          %127 = vsyncadd [#allocation3], 0
          %s128 = sshll.u32 %s0, 4
          %s129 = int_to_ptr.hbm [resolvable:$true] %s128
          %s130 = sshll.u32 [#allocation2], 4
          %s131 = int_to_ptr.vmem [resolvable:$true] %s130
          %136 = dma.hbm_to_vmem [thread:$0]  %s129, 256, %s131, [#allocation3], 128, 128, 8
        $region16: #{tpu_custom_call.1} parent=11 // pred_fallthru
          _
        // Predicated region
        $region17: #{tpu_custom_call.1} parent=11 // pred_check
          %p137 = pneg %p56
        $region18: #{tpu_custom_call.1} parent=11 // pred_check_branch
          %139 = sbr.rel (%p137) target = $region20
        $region19: #{tpu_custom_call.1} parent=11 // pred_region
          %141 = vsyncadd [#allocation6], 0
          %s142 = sshll.u32 %s1, 4
          %s143 = int_to_ptr.hbm [resolvable:$true] %s142
          %s144 = sshll.u32 [#allocation5], 4
          %s145 = int_to_ptr.vmem [resolvable:$true] %s144
          %150 = dma.hbm_to_vmem [thread:$0]  %s143, 256, %s145, [#allocation6], 128, 128, 8
        $region20: #{tpu_custom_call.1} parent=11 // pred_fallthru
          _
      $region12: #{tpu_custom_call.1} parent=5 // pred_fallthru
        _
      %p151 = scmp.lt.s32.totalorder %s14, 2
      // Predicated region
      $region21: #{tpu_custom_call.1} parent=5 // pred_check
        %p152 = pneg %p151
      $region22: #{tpu_custom_call.1} parent=5 // pred_check_branch
        %154 = sbr.rel (%p152) target = $region24
      $region23: #{tpu_custom_call.1} parent=5 // pred_region
        // Predicated region
        $region25: #{tpu_custom_call.1} parent=23 // pred_check
          %p155 = pneg %p76
        $region26: #{tpu_custom_call.1} parent=23 // pred_check_branch
          %157 = sbr.rel (%p155) target = $region28
        $region27: #{tpu_custom_call.1} parent=23 // pred_region
          %s158 = sand.u32 %s14, 1
          %s159 = scalar_lea.sflag [#allocation3], %s158
          %s160 = sand.u32 %s66, 1
          %s161 = smul.addr %s160, 64
          %s162 = scalar_lea.vmem [#allocation7], %s161
          %s163 = smul.u32 4, %s14
          %165 = vsyncadd %s159, 0
          %s166 = smul.addr %s163, 2
          %s167 = smul.addr %s166, 8
          %s168 = scalar_lea.hbm %s2, %s167
          %s169 = sshll.u32 %s168, 4
          %s170 = int_to_ptr.hbm [resolvable:$true] %s169
          %s171 = sshll.u32 %s162, 4
          %s172 = int_to_ptr.vmem [resolvable:$true] %s171
          %177 = dma.hbm_to_vmem [thread:$0]  %s170, 1024, %s172, %s159, 128, 128, 8
        $region28: #{tpu_custom_call.1} parent=23 // pred_fallthru
          _
      $region24: #{tpu_custom_call.1} parent=5 // pred_fallthru
        _
      %p178 = scmp.le.s32.totalorder 1, %s14
      %p179 = scmp.lt.s32.totalorder %s14, 3
      %p180 = pnand %p178, %p179
      %p181 = pneg %p180
      // Predicated region
      $region29: #{tpu_custom_call.1} parent=5 // pred_check
        _
      $region30: #{tpu_custom_call.1} parent=5 // pred_check_branch
        %183 = sbr.rel (%p180) target = $region32
      $region31: #{tpu_custom_call.1} parent=5 // pred_region
        %s184 = ssub.s32 %s14, 1
        // Predicated region
        $region33: #{tpu_custom_call.1} parent=31 // pred_check
          %p185 = pneg %p35
        $region34: #{tpu_custom_call.1} parent=31 // pred_check_branch
          %187 = sbr.rel (%p185) target = $region36
        $region35: #{tpu_custom_call.1} parent=31 // pred_region
          %189 = dma.done [#allocation3], 256
        $region36: #{tpu_custom_call.1} parent=31 // pred_fallthru
          _
        // Predicated region
        $region37: #{tpu_custom_call.1} parent=31 // pred_check
          %p190 = pneg %p56
        $region38: #{tpu_custom_call.1} parent=31 // pred_check_branch
          %192 = sbr.rel (%p190) target = $region40
        $region39: #{tpu_custom_call.1} parent=31 // pred_region
          %194 = dma.done [#allocation6], 256
        $region40: #{tpu_custom_call.1} parent=31 // pred_fallthru
          _
        %s195 = sand.u32 %s19, 1
        %s196 = scalar_lea.sflag [#allocation3], %s195
        %s197 = sand.u32 %s69, 1
        %s198 = smul.addr %s197, 64
        %s199 = scalar_lea.vmem [#allocation7], %s198
        // Predicated region
        $region41: #{tpu_custom_call.1} parent=31 // pred_check
          %p200 = pneg %p82
        $region42: #{tpu_custom_call.1} parent=31 // pred_check_branch
          %202 = sbr.rel (%p200) target = $region44
        $region43: #{tpu_custom_call.1} parent=31 // pred_region
          %204 = dma.done %s196, 1024
        $region44: #{tpu_custom_call.1} parent=31 // pred_fallthru
          _
        %p205 = pneg %p35
        %p206 = pneg %p32
        %p207 = pneg %p56
        %p208 = pneg %p53
        %s209 = sand.u32 %s19, 1
        %s210 = scalar_lea.sflag [#allocation3], %s209
        %s211 = sand.u32 %s69, 1
        %s212 = smul.addr %s211, 64
        %s213 = scalar_lea.vmem [#allocation7], %s212
        %p214 = pneg %p82
        %p215 = pneg %p79
        %p216 = pneg %p108
        %p217 = pneg %p105
        %s218 = sand.u32 %s95, 1
        %s219 = scalar_lea.sflag [#allocation4], %s218
        %s220 = sand.u32 %s95, 1
        %s221 = smul.addr %s220, 64
        %s222 = scalar_lea.vmem [#allocation8], %s221
        %s223 = smul.u32 4, %s19
        %s224 = smul.u32 4, %s19
        %v225 = vld [vmem:[#allocation2] sm:$0xff]
        %v226 = vld [vmem:[#allocation2 + $0x8] sm:$0xff]
        %v227 = vld [vmem:[#allocation5] sm:$0xff]
        %v228 = vld [vmem:[#allocation5 + $0x8] sm:$0xff]
        %v229 = vld [vmem:[%s199] sm:$0xff]
        %v230 = vld [vmem:[%s199 + $0x8] sm:$0xff]
        %v231 = vld [vmem:[%s199 + $0x10] sm:$0xff]
        %v232 = vld [vmem:[%s199 + $0x18] sm:$0xff]
        %v233 = vld [vmem:[%s199 + $0x20] sm:$0xff]
        %v234 = vld [vmem:[%s199 + $0x28] sm:$0xff]
        %v235 = vld [vmem:[%s199 + $0x30] sm:$0xff]
        %v236 = vld [vmem:[%s199 + $0x38] sm:$0xff]
        %vm237 = vcmask 130048
        %v239 = vsel %vm237, %v229, 0
        %v242 = vsel %vm237, %v230, 0
        %v245 = vsel %vm237, %v231, 0
        %v248 = vsel %vm237, %v232, 0
        %v251 = vsel %vm237, %v233, 0
        %v254 = vsel %vm237, %v234, 0
        %v257 = vsel %vm237, %v235, 0
        %v260 = vsel %vm237, %v236, 0
        %262 = vmatpush.msra.mxu0 0.0
        %263 = vmatpush.msra.mxu0 0.0
        %264 = vmatpush.msra.mxu0 0.0
        %265 = vmatpush.msra.mxu0 0.0
        %266 = vmatpush.msra.mxu0 0.0
        %267 = vmatpush.msra.mxu0 0.0
        %268 = vmatpush.msra.mxu0 0.0
        %269 = vmatpush.msra.mxu0 0.0
        %270 = vmatpush.msra.mxu0 0.0
        %271 = vmatpush.msra.mxu0 0.0
        %272 = vmatpush.msra.mxu0 0.0
        %273 = vmatpush.msra.mxu0 0.0
        %274 = vmatpush.msra.mxu0 0.0
        %275 = vmatpush.msra.mxu0 0.0
        %276 = vmatpush.msra.mxu0 %v228
        %277 = vmatpush.msra.mxu0 %v227
        %278 = vmatmul.f32.gmra.mxu0 %v239
        %v279 = vpop.f32.mrf.mxu0
        %v280 = vadd.f32 0.0, %v279
        %281 = vmatmul.f32.gmra.mxu0 %v242
        %v282 = vpop.f32.mrf.mxu0
        %v283 = vadd.f32 0.0, %v282
        %284 = vmatmul.f32.gmra.mxu0 %v245
        %v285 = vpop.f32.mrf.mxu0
        %v286 = vadd.f32 0.0, %v285
        %287 = vmatmul.f32.gmra.mxu0 %v248
        %v288 = vpop.f32.mrf.mxu0
        %v289 = vadd.f32 0.0, %v288
        %290 = vmatmul.f32.gmra.mxu0 %v251
        %v291 = vpop.f32.mrf.mxu0
        %v292 = vadd.f32 0.0, %v291
        %293 = vmatmul.f32.gmra.mxu0 %v254
        %v294 = vpop.f32.mrf.mxu0
        %v295 = vadd.f32 0.0, %v294
        %296 = vmatmul.f32.gmra.mxu0 %v257
        %v297 = vpop.f32.mrf.mxu0
        %v298 = vadd.f32 0.0, %v297
        %299 = vmatmul.f32.gmra.mxu0 %v260
        %v300 = vpop.f32.mrf.mxu0
        %v301 = vadd.f32 0.0, %v300
        %302 = vdwg.mxu0
        %v304 = vsel %vm237, %v225, 0
        %v307 = vsel %vm237, %v226, 0
        %309 = vmatpush.msra.mxu0 0.0
        %310 = vmatpush.msra.mxu0 0.0
        %311 = vmatpush.msra.mxu0 0.0
        %312 = vmatpush.msra.mxu0 0.0
        %313 = vmatpush.msra.mxu0 0.0
        %314 = vmatpush.msra.mxu0 0.0
        %315 = vmatpush.msra.mxu0 0.0
        %316 = vmatpush.msra.mxu0 0.0
        %317 = vmatpush.msra.mxu0 0.0
        %318 = vmatpush.msra.mxu0 0.0
        %319 = vmatpush.msra.mxu0 0.0
        %320 = vmatpush.msra.mxu0 0.0
        %321 = vmatpush.msra.mxu0 0.0
        %322 = vmatpush.msra.mxu0 0.0
        %323 = vmatpush.msra.mxu0 %v283
        %324 = vmatpush.msra.mxu0 %v280
        %325 = vmatmul.f32.gmra.mxu0 %v304
        %v326 = vpop.f32.mrf.mxu0
        %v327 = vadd.f32 0.0, %v326
        %328 = vmatmul.f32.gmra.mxu0 %v307
        %v329 = vpop.f32.mrf.mxu0
        %v330 = vadd.f32 0.0, %v329
        %331 = vdwg.mxu0
        %332 = vst.msk [vmem:[%s222] sm:$0xff] %vm237, %v327
        %333 = vst.msk [vmem:[%s222 + $0x8] sm:$0xff] %vm237, %v330
        %334 = vmatpush.msra.mxu0 0.0
        %335 = vmatpush.msra.mxu0 0.0
        %336 = vmatpush.msra.mxu0 0.0
        %337 = vmatpush.msra.mxu0 0.0
        %338 = vmatpush.msra.mxu0 0.0
        %339 = vmatpush.msra.mxu0 0.0
        %340 = vmatpush.msra.mxu0 0.0
        %341 = vmatpush.msra.mxu0 0.0
        %342 = vmatpush.msra.mxu0 0.0
        %343 = vmatpush.msra.mxu0 0.0
        %344 = vmatpush.msra.mxu0 0.0
        %345 = vmatpush.msra.mxu0 0.0
        %346 = vmatpush.msra.mxu0 0.0
        %347 = vmatpush.msra.mxu0 0.0
        %348 = vmatpush.msra.mxu0 %v289
        %349 = vmatpush.msra.mxu0 %v286
        %350 = vmatmul.f32.gmra.mxu0 %v304
        %v351 = vpop.f32.mrf.mxu0
        %v352 = vadd.f32 0.0, %v351
        %353 = vmatmul.f32.gmra.mxu0 %v307
        %v354 = vpop.f32.mrf.mxu0
        %v355 = vadd.f32 0.0, %v354
        %356 = vdwg.mxu0
        %s357 = scalar_lea.vmem %s222, 16 [#allocation8]
        %358 = vst.msk [vmem:[%s357] sm:$0xff] %vm237, %v352
        %359 = vst.msk [vmem:[%s357 + $0x8] sm:$0xff] %vm237, %v355
        %360 = vmatpush.msra.mxu0 0.0
        %361 = vmatpush.msra.mxu0 0.0
        %362 = vmatpush.msra.mxu0 0.0
        %363 = vmatpush.msra.mxu0 0.0
        %364 = vmatpush.msra.mxu0 0.0
        %365 = vmatpush.msra.mxu0 0.0
        %366 = vmatpush.msra.mxu0 0.0
        %367 = vmatpush.msra.mxu0 0.0
        %368 = vmatpush.msra.mxu0 0.0
        %369 = vmatpush.msra.mxu0 0.0
        %370 = vmatpush.msra.mxu0 0.0
        %371 = vmatpush.msra.mxu0 0.0
        %372 = vmatpush.msra.mxu0 0.0
        %373 = vmatpush.msra.mxu0 0.0
        %374 = vmatpush.msra.mxu0 %v295
        %375 = vmatpush.msra.mxu0 %v292
        %376 = vmatmul.f32.gmra.mxu0 %v304
        %v377 = vpop.f32.mrf.mxu0
        %v378 = vadd.f32 0.0, %v377
        %379 = vmatmul.f32.gmra.mxu0 %v307
        %v380 = vpop.f32.mrf.mxu0
        %v381 = vadd.f32 0.0, %v380
        %382 = vdwg.mxu0
        %s383 = scalar_lea.vmem %s222, 32 [#allocation8]
        %384 = vst.msk [vmem:[%s383] sm:$0xff] %vm237, %v378
        %385 = vst.msk [vmem:[%s383 + $0x8] sm:$0xff] %vm237, %v381
        %386 = vmatpush.msra.mxu0 0.0
        %387 = vmatpush.msra.mxu0 0.0
        %388 = vmatpush.msra.mxu0 0.0
        %389 = vmatpush.msra.mxu0 0.0
        %390 = vmatpush.msra.mxu0 0.0
        %391 = vmatpush.msra.mxu0 0.0
        %392 = vmatpush.msra.mxu0 0.0
        %393 = vmatpush.msra.mxu0 0.0
        %394 = vmatpush.msra.mxu0 0.0
        %395 = vmatpush.msra.mxu0 0.0
        %396 = vmatpush.msra.mxu0 0.0
        %397 = vmatpush.msra.mxu0 0.0
        %398 = vmatpush.msra.mxu0 0.0
        %399 = vmatpush.msra.mxu0 0.0
        %400 = vmatpush.msra.mxu0 %v301
        %401 = vmatpush.msra.mxu0 %v298
        %402 = vmatmul.f32.gmra.mxu0 %v304
        %v403 = vpop.f32.mrf.mxu0
        %v404 = vadd.f32 0.0, %v403
        %405 = vmatmul.f32.gmra.mxu0 %v307
        %v406 = vpop.f32.mrf.mxu0
        %v407 = vadd.f32 0.0, %v406
        %408 = vdwg.mxu0
        %s409 = scalar_lea.vmem %s222, 48 [#allocation8]
        %410 = vst.msk [vmem:[%s409] sm:$0xff] %vm237, %v404
        %411 = vst.msk [vmem:[%s409 + $0x8] sm:$0xff] %vm237, %v407
        %s412 = sand.u32 %s95, 1
        %s413 = scalar_lea.sflag [#allocation4], %s412
        %s414 = sand.u32 %s95, 1
        %s415 = smul.addr %s414, 64
        %s416 = scalar_lea.vmem [#allocation8], %s415
        // Predicated region
        $region45: #{tpu_custom_call.1} parent=31 // pred_check
          %p417 = pneg %p105
        $region46: #{tpu_custom_call.1} parent=31 // pred_check_branch
          %419 = sbr.rel (%p417) target = $region48
        $region47: #{tpu_custom_call.1} parent=31 // pred_region
          %s420 = smul.u32 4, %s19
          %422 = vsyncadd %s413, 0
          %s423 = smul.addr %s420, 2
          %s424 = smul.addr %s423, 8
          %s425 = scalar_lea.hbm %s3, %s424
          %s426 = sshll.u32 %s416, 4
          %s427 = int_to_ptr.vmem [resolvable:$true] %s426
          %s428 = sshll.u32 %s425, 4
          %s429 = int_to_ptr.hbm [resolvable:$true] %s428
          %434 = dma.vmem_to_hbm [thread:$0]  %s427, 1024, %s429, %s413, 128, 128, 8
        $region48: #{tpu_custom_call.1} parent=31 // pred_fallthru
          _
      $region32: #{tpu_custom_call.1} parent=5 // pred_fallthru
        _
      %p435 = scmp.le.s32.totalorder 2, %s14
      // Predicated region
      $region49: #{tpu_custom_call.1} parent=5 // pred_check
        %p436 = pneg %p435
      $region50: #{tpu_custom_call.1} parent=5 // pred_check_branch
        %438 = sbr.rel (%p436) target = $region52
      $region51: #{tpu_custom_call.1} parent=5 // pred_region
        %s439 = ssub.s32 %s14, 2
        // Predicated region
        $region53: #{tpu_custom_call.1} parent=51 // pred_check
          %p440 = pneg %p111
        $region54: #{tpu_custom_call.1} parent=51 // pred_check_branch
          %442 = sbr.rel (%p440) target = $region56
        $region55: #{tpu_custom_call.1} parent=51 // pred_region
          %s443 = sand.u32 %s96, 1
          %s444 = scalar_lea.sflag [#allocation4], %s443
          %s445 = sand.u32 %s96, 1
          %s446 = smul.addr %s445, 64
          %s447 = scalar_lea.vmem [#allocation8], %s446
          %449 = dma.done %s444, 1024
        $region56: #{tpu_custom_call.1} parent=51 // pred_fallthru
          _
      $region52: #{tpu_custom_call.1} parent=5 // pred_fallthru
        _
    $region6: #{tpu_custom_call.1} parent=1 // loop_footer
      %s18 = sadd.s32 1, %s14
    $region7: #{tpu_custom_call.1} parent=1 // loop_footer_branch
      %13 = sbr.rel target = $region3
    $region8: #{tpu_custom_call.1} parent=1 // loop_exit
      _
    %450 = vsyncpa [#allocation3], 1
    %s451 = scalar_lea.sflag [#allocation3], 1
    %452 = vsyncpa %s451, 1
    %453 = vsyncpa [#allocation6], 1
    %454 = vsyncpa [#allocation4], 1
    %s455 = scalar_lea.sflag [#allocation4], 1
    %456 = vsyncpa %s455, 1

</llo_original>
